<compile_context>
chip_gen: v7x
topology: tpu7x:2x2x1
jax: 0.10.0
libtpu: 0.0.40
codegen_flags: <defaults>
</compile_context>

<pallas_src>
import math
from functools import partial

import numpy as np
import jax
import jax.numpy as jnp
from jax.experimental import pallas as pl
from jax.experimental.pallas import tpu as pltpu


_DEFAULT_BLOCK_BUDGET_BYTES = 4 * 1024 * 1024   # per x block; ~4x live (in/out x double-buffer)
_MAX_SAMPLES_PER_STEP = 256                     # bound on per-step sample loop
_STATIC_UNROLL_MAX = 16                         # full Python unroll up to this many samples


def _round_up(v, m):
    return -(-v // m) * m


def _choose_tiles(B, C, HW, itemsize, budget):
    """Pick (TB, TC): samples-per-step and channels-per-step.

    Budgets against the padded VMEM footprint of a block ((8,128) tiling pads
    C up to a multiple of 8 and H*W up to a multiple of 128), not raw bytes.
    """
    padded_hw = _round_up(HW, 128)
    padded_sample = _round_up(C, 8) * padded_hw * itemsize
    if padded_sample <= budget:
        TB = int(min(B, _MAX_SAMPLES_PER_STEP, max(1, budget // padded_sample)))
        TC = C
    else:
        # Single sample exceeds the budget: chunk channels with a block that
        # divides C and is a multiple of 8 (TPU sublane constraint).
        TB = 1
        TC = C  # fallback: whole-sample block (may exceed budget for huge C*H*W)
        cand = (C // 8) * 8
        while cand >= 8:
            if C % cand == 0 and _round_up(cand, 8) * padded_hw * itemsize <= budget:
                TC = cand
                break
            cand -= 8
    return TB, TC


def _cutout_kernel(corner_y_ref, corner_x_ref, csize_ref,
                   row_ref, col_ref, x_ref, o_ref, *, tb, value):
    # corner_y_ref / corner_x_ref: (nb*TB,) int32 in SMEM
    # csize_ref:                   (1,)     int32 in SMEM
    # row_ref / col_ref:           (1, HW)  int32 in VMEM (pixel row / col ids)
    # x_ref / o_ref:               (TB, TC, HW) tile in VMEM
    cs = csize_ref[0]
    b0 = pl.program_id(0) * tb
    rows = row_ref[...]                                   # hoisted out of the loop
    cols = col_ref[...]
    fill = jnp.asarray(value, dtype=o_ref.dtype)

    def apply_one(s):
        cy = corner_y_ref[b0 + s]
        cx = corner_x_ref[b0 + s]
        mask = ((rows >= cy) & (rows < cy + cs)
                & (cols >= cx) & (cols < cx + cs))        # (1, HW), per *sample*
        o_ref[s] = jnp.where(mask, fill, x_ref[s])        # (TC, HW), mask bcast over C

    if tb <= _STATIC_UNROLL_MAX:
        for s in range(tb):                               # static, small
            apply_one(s)
    else:
        def body(s, carry):
            apply_one(s)
            return carry
        jax.lax.fori_loop(0, tb, body, None, unroll=8)


def batch_cutout_pallas(x, corner_y, corner_x, cutout_size, value=0.0,
                        block_budget_bytes=_DEFAULT_BLOCK_BUDGET_BYTES):
    """Apply per-sample square cutout to x of shape (B, C, H, W)."""
    B, C, H, W = x.shape
    HW = H * W
    itemsize = jnp.dtype(x.dtype).itemsize
    TB, TC = _choose_tiles(B, C, HW, itemsize, block_budget_bytes)
    nb = pl.cdiv(B, TB)
    nc = pl.cdiv(C, TC)

    # Lane-dense view: last dim is H*W.
    x_flat = x.reshape(B, C, HW)

    # Pad corner arrays so SMEM reads for a possibly-partial last batch block
    # stay in bounds; stores for padded samples are dropped by the pipeline.
    pad = nb * TB - B
    corner_y = jnp.pad(corner_y.astype(jnp.int32), (0, pad))
    corner_x = jnp.pad(corner_x.astype(jnp.int32), (0, pad))
    csize = jnp.reshape(jnp.asarray(cutout_size, dtype=jnp.int32), (1,))

    # Precomputed pixel row / column ids for the flattened spatial axis
    # (avoids in-kernel integer div/mod; constant block index -> fetched once).
    row_ids = jnp.asarray(np.repeat(np.arange(H, dtype=np.int32), W)[None, :])
    col_ids = jnp.asarray(np.tile(np.arange(W, dtype=np.int32), H)[None, :])

    kernel = partial(_cutout_kernel, tb=TB, value=value)

    # TODO(synk): further roofline cut: alias x to the output and only DMA the
    # rows intersecting the cutout square instead of streaming the full tensor
    # through HBM twice (needs donation guarantees from the caller).
    out = pl.pallas_call(
        kernel,
        out_shape=jax.ShapeDtypeStruct((B, C, HW), x.dtype),
        grid=(nb, nc),
        in_specs=[
            pl.BlockSpec(memory_space=pltpu.SMEM),                 # corner_y
            pl.BlockSpec(memory_space=pltpu.SMEM),                 # corner_x
            pl.BlockSpec(memory_space=pltpu.SMEM),                 # cutout_size
            pl.BlockSpec((1, HW), lambda bi, ci: (0, 0)),          # row ids
            pl.BlockSpec((1, HW), lambda bi, ci: (0, 0)),          # col ids
            pl.BlockSpec((TB, TC, HW), lambda bi, ci: (bi, ci, 0)),
        ],
        out_specs=pl.BlockSpec((TB, TC, HW), lambda bi, ci: (bi, ci, 0)),
        compiler_params=pltpu.CompilerParams(
            dimension_semantics=("parallel", "parallel"),
            vmem_limit_bytes=32 * 1024 * 1024,
        ),
    )(corner_y, corner_x, csize, row_ids, col_ids, x_flat)

    return out.reshape(B, C, H, W)


class BatchCutoutJax:
    """JAX/Pallas equivalent of the PyTorch BatchCutout module."""

    def __init__(self, p=0.5, scale=(0.0, 0.33), value=0.0):
        # NOTE: `p` is stored but unused in forward, exactly like the PyTorch module.
        self.p = p
        self.scale = scale
        self.value = value

    def __call__(self, x, key):
        B, C, H, W = x.shape
        size = W  # x.shape[-1], mirrors PyTorch
        k_size, k_y, k_x = jax.random.split(key, 3)

        low = math.floor(self.scale[0] * size)
        high = math.ceil(self.scale[1] * size)  # exclusive, like torch.randint
        # Traced device scalar: no .item()/int() host sync, keeps __call__ jittable.
        cutout_size = jax.random.randint(k_size, (), low, high, dtype=jnp.int32)

        # Guard against non-square inputs where cutout_size could exceed H.
        max_y = jnp.maximum(H - cutout_size, 0)
        max_x = jnp.maximum(W - cutout_size, 0)
        corner_y = jax.random.randint(k_y, (B,), 0, max_y + 1)
        corner_x = jax.random.randint(k_x, (B,), 0, max_x + 1)

        return batch_cutout_pallas(x, corner_y, corner_x, cutout_size, self.value)


def _reference(x, corner_y, corner_x, cutout_size, value):
    B, C, H, W = x.shape
    dy = jnp.arange(H).reshape(1, 1, H, 1) - corner_y.reshape(-1, 1, 1, 1)
    dx = jnp.arange(W).reshape(1, 1, 1, W) - corner_x.reshape(-1, 1, 1, 1)
    mask = (dy >= 0) & (dy < cutout_size) & (dx >= 0) & (dx < cutout_size)
    return jnp.where(mask, jnp.asarray(value, x.dtype), x)


if __name__ == "__main__":
    key = jax.random.PRNGKey(0)
    k_data, k_fwd, k2, k3, k4 = jax.random.split(key, 5)

    # --- Test 1: module forward at the spec shape, checked vs pure-JAX ref ---
    B, C, H, W = 2, 4, 16, 16
    x = jax.random.normal(k_data, (B, C, H, W), dtype=jnp.float32)

    module = BatchCutoutJax(p=0.5, scale=(0.0, 0.33), value=0.0)
    out = jax.block_until_ready(module(x, k_fwd))

    # Re-derive the same randoms the module draws for the reference check.
    size = W
    k_size, k_y, k_x = jax.random.split(k_fwd, 3)
    low = math.floor(module.scale[0] * size)
    high = math.ceil(module.scale[1] * size)
    cutout_size = jax.random.randint(k_size, (), low, high, dtype=jnp.int32)
    max_y = jnp.maximum(H - cutout_size, 0)
    max_x = jnp.maximum(W - cutout_size, 0)
    corner_y = jax.random.randint(k_y, (B,), 0, max_y + 1)
    corner_x = jax.random.randint(k_x, (B,), 0, max_x + 1)
    ref = _reference(x, corner_y, corner_x, cutout_size, module.value)

    assert out.shape == x.shape and out.dtype == x.dtype
    assert jnp.array_equal(out, ref), "mismatch vs reference"

    # Forward is jittable (no host round-trip for cutout_size).
    out_jit = jax.block_until_ready(jax.jit(module.__call__)(x, k_fwd))
    assert jnp.array_equal(out_jit, out), "jit mismatch vs eager"

    # --- Test 2: non-square image, explicit corners ---
    x2 = jax.random.normal(k2, (3, 5, 8, 16), dtype=jnp.float32)
    cy2 = jnp.array([0, 2, 4], dtype=jnp.int32)
    cx2 = jnp.array([1, 5, 12], dtype=jnp.int32)
    o2 = jax.block_until_ready(batch_cutout_pallas(x2, cy2, cx2, 4, value=0.0))
    assert jnp.array_equal(o2, _reference(x2, cy2, cx2, 4, 0.0)), "non-square mismatch"

    # --- Test 3: larger batch -> fori_loop path (TB > static unroll cap) ---
    x3 = jax.random.normal(k3, (40, 3, 16, 16), dtype=jnp.float32)
    cy3 = jax.random.randint(k3, (40,), 0, 12, dtype=jnp.int32)
    cx3 = jax.random.randint(k4, (40,), 0, 12, dtype=jnp.int32)
    o3 = jax.block_until_ready(batch_cutout_pallas(x3, cy3, cx3, 5, value=0.0))
    assert jnp.array_equal(o3, _reference(x3, cy3, cx3, 5, 0.0)), "large-batch mismatch"

    # --- Test 4: force small block budget -> partial batch blocks + padding ---
    x4 = jax.random.normal(k4, (10, 3, 16, 16), dtype=jnp.float32)
    cy4 = jax.random.randint(k2, (10,), 0, 12, dtype=jnp.int32)
    cx4 = jax.random.randint(k3, (10,), 0, 12, dtype=jnp.int32)
    o4 = jax.block_until_ready(
        batch_cutout_pallas(x4, cy4, cx4, 5, value=0.0,
                            block_budget_bytes=3 * 8 * 256 * 4))
    assert jnp.array_equal(o4, _reference(x4, cy4, cx4, 5, 0.0)), "partial-block mismatch"

    print("KERNEL_OK")
</pallas_src>

<mosaic_0001>
module attributes {stable_mosaic.version = 11 : i64} {
  func.func @_cutout_kernel(%arg0: i32, %arg1: i32, %arg2: memref<2xi32, #tpu.memory_space<smem>>, %arg3: memref<2xi32, #tpu.memory_space<smem>>, %arg4: memref<1xi32, #tpu.memory_space<smem>>, %arg5: memref<1x256xi32, #tpu.memory_space<vmem>>, %arg6: memref<1x256xi32, #tpu.memory_space<vmem>>, %arg7: memref<2x4x256xf32, #tpu.memory_space<vmem>>, %arg8: memref<2x4x256xf32, #tpu.memory_space<vmem>>) attributes {dimension_semantics = [#tpu.dimension_semantics<parallel>, #tpu.dimension_semantics<parallel>], iteration_bounds = array<i64: 1, 1>, scalar_prefetch = 0 : i64, scratch_operands = 0 : i64, tpu.core_type = #tpu.core_type<tc>, window_params = [{transform_indices = @transform_0, window_bounds = array<i64: 2>}, {transform_indices = @transform_1, window_bounds = array<i64: 2>}, {transform_indices = @transform_2, window_bounds = array<i64: 1>}, {pipeline_mode = #tpu.pipeline_mode<synchronous>, transform_indices = @transform_3, window_bounds = array<i64: 1, 256>}, {pipeline_mode = #tpu.pipeline_mode<synchronous>, transform_indices = @transform_4, window_bounds = array<i64: 1, 256>}, {transform_indices = @transform_5, window_bounds = array<i64: 2, 4, 256>}, {transform_indices = @transform_6, window_bounds = array<i64: 2, 4, 256>}]} {
    %c0 = arith.constant 0 : index
    %0 = memref.load %arg4[%c0] : memref<1xi32, #tpu.memory_space<smem>>
    %c2_i32 = arith.constant 2 : i32
    %1 = arith.muli %arg0, %c2_i32 : i32
    %c0_0 = arith.constant 0 : index
    %c0_1 = arith.constant 0 : index
    %2 = vector.load %arg5[%c0_0, %c0_1] : memref<1x256xi32, #tpu.memory_space<vmem>>, vector<1x256xi32>
    %c0_2 = arith.constant 0 : index
    %c0_3 = arith.constant 0 : index
    %3 = vector.load %arg6[%c0_2, %c0_3] : memref<1x256xi32, #tpu.memory_space<vmem>>, vector<1x256xi32>
    %c0_i32 = arith.constant 0 : i32
    %4 = arith.addi %1, %c0_i32 : i32
    %5 = arith.index_cast %4 : i32 to index
    %6 = memref.load %arg2[%5] : memref<2xi32, #tpu.memory_space<smem>>
    %c0_i32_4 = arith.constant 0 : i32
    %7 = arith.addi %1, %c0_i32_4 : i32
    %8 = arith.index_cast %7 : i32 to index
    %9 = memref.load %arg3[%8] : memref<2xi32, #tpu.memory_space<smem>>
    %10 = vector.broadcast %6 : i32 to vector<1x256xi32>
    %11 = arith.cmpi sge, %2, %10 : vector<1x256xi32>
    %12 = arith.addi %6, %0 : i32
    %13 = vector.broadcast %12 : i32 to vector<1x256xi32>
    %14 = arith.cmpi slt, %2, %13 : vector<1x256xi32>
    %15 = arith.andi %11, %14 : vector<1x256xi1>
    %16 = vector.broadcast %9 : i32 to vector<1x256xi32>
    %17 = arith.cmpi sge, %3, %16 : vector<1x256xi32>
    %18 = arith.andi %15, %17 : vector<1x256xi1>
    %19 = arith.addi %9, %0 : i32
    %20 = vector.broadcast %19 : i32 to vector<1x256xi32>
    %21 = arith.cmpi slt, %3, %20 : vector<1x256xi32>
    %22 = arith.andi %18, %21 : vector<1x256xi1>
    %c0_5 = arith.constant 0 : index
    %c0_6 = arith.constant 0 : index
    %c0_7 = arith.constant 0 : index
    %23 = vector.load %arg7[%c0_5, %c0_6, %c0_7] : memref<2x4x256xf32, #tpu.memory_space<vmem>>, vector<1x4x256xf32>
    %24 = vector.shape_cast %23 : vector<1x4x256xf32> to vector<4x256xf32>
    %cst = arith.constant 0.000000e+00 : f32
    %25 = vector.shape_cast %22 : vector<1x256xi1> to vector<1x256xi1>
    %26 = vector.broadcast %25 : vector<1x256xi1> to vector<4x256xi1>
    %27 = vector.broadcast %cst : f32 to vector<4x256xf32>
    %28 = arith.select %26, %27, %24 : vector<4x256xi1>, vector<4x256xf32>
    %c0_8 = arith.constant 0 : index
    %c0_9 = arith.constant 0 : index
    %c0_10 = arith.constant 0 : index
    %29 = vector.load %arg8[%c0_8, %c0_9, %c0_10] : memref<2x4x256xf32, #tpu.memory_space<vmem>>, vector<1x4x256xf32>
    %30 = vector.shape_cast %29 : vector<1x4x256xf32> to vector<4x256xf32>
    %31 = vector.shape_cast %28 : vector<4x256xf32> to vector<1x4x256xf32>
    tpu.vector_store %arg8[%c0_8, %c0_9, %c0_10], %31 {strides = array<i32>} : memref<2x4x256xf32, #tpu.memory_space<vmem>>, vector<1x4x256xf32>,
    %c1_i32 = arith.constant 1 : i32
    %32 = arith.addi %1, %c1_i32 : i32
    %33 = arith.index_cast %32 : i32 to index
    %34 = memref.load %arg2[%33] : memref<2xi32, #tpu.memory_space<smem>>
    %c1_i32_11 = arith.constant 1 : i32
    %35 = arith.addi %1, %c1_i32_11 : i32
    %36 = arith.index_cast %35 : i32 to index
    %37 = memref.load %arg3[%36] : memref<2xi32, #tpu.memory_space<smem>>
    %38 = vector.broadcast %34 : i32 to vector<1x256xi32>
    %39 = arith.cmpi sge, %2, %38 : vector<1x256xi32>
    %40 = arith.addi %34, %0 : i32
    %41 = vector.broadcast %40 : i32 to vector<1x256xi32>
    %42 = arith.cmpi slt, %2, %41 : vector<1x256xi32>
    %43 = arith.andi %39, %42 : vector<1x256xi1>
    %44 = vector.broadcast %37 : i32 to vector<1x256xi32>
    %45 = arith.cmpi sge, %3, %44 : vector<1x256xi32>
    %46 = arith.andi %43, %45 : vector<1x256xi1>
    %47 = arith.addi %37, %0 : i32
    %48 = vector.broadcast %47 : i32 to vector<1x256xi32>
    %49 = arith.cmpi slt, %3, %48 : vector<1x256xi32>
    %50 = arith.andi %46, %49 : vector<1x256xi1>
    %c1 = arith.constant 1 : index
    %c0_12 = arith.constant 0 : index
    %c0_13 = arith.constant 0 : index
    %51 = vector.load %arg7[%c1, %c0_12, %c0_13] : memref<2x4x256xf32, #tpu.memory_space<vmem>>, vector<1x4x256xf32>
    %52 = vector.shape_cast %51 : vector<1x4x256xf32> to vector<4x256xf32>
    %cst_14 = arith.constant 0.000000e+00 : f32
    %53 = vector.shape_cast %50 : vector<1x256xi1> to vector<1x256xi1>
    %54 = vector.broadcast %53 : vector<1x256xi1> to vector<4x256xi1>
    %55 = vector.broadcast %cst_14 : f32 to vector<4x256xf32>
    %56 = arith.select %54, %55, %52 : vector<4x256xi1>, vector<4x256xf32>
    %c1_15 = arith.constant 1 : index
    %c0_16 = arith.constant 0 : index
    %c0_17 = arith.constant 0 : index
    %57 = vector.load %arg8[%c1_15, %c0_16, %c0_17] : memref<2x4x256xf32, #tpu.memory_space<vmem>>, vector<1x4x256xf32>
    %58 = vector.shape_cast %57 : vector<1x4x256xf32> to vector<4x256xf32>
    %59 = vector.shape_cast %56 : vector<4x256xf32> to vector<1x4x256xf32>
    tpu.vector_store %arg8[%c1_15, %c0_16, %c0_17], %59 {strides = array<i32>} : memref<2x4x256xf32, #tpu.memory_space<vmem>>, vector<1x4x256xf32>,
    return
  }
  func.func @transform_0(%arg0: i32, %arg1: i32) -> i32 {
    %c0_i32 = arith.constant 0 : i32
    %c0_i32_0 = arith.constant 0 : i32
    return %c0_i32 : i32
  }
  func.func @transform_1(%arg0: i32, %arg1: i32) -> i32 {
    %c0_i32 = arith.constant 0 : i32
    %c0_i32_0 = arith.constant 0 : i32
    return %c0_i32 : i32
  }
  func.func @transform_2(%arg0: i32, %arg1: i32) -> i32 {
    %c0_i32 = arith.constant 0 : i32
    %c0_i32_0 = arith.constant 0 : i32
    return %c0_i32 : i32
  }
  func.func @transform_3(%arg0: i32, %arg1: i32) -> (i32, i32) {
    %c0_i32 = arith.constant 0 : i32
    %c0_i32_0 = arith.constant 0 : i32
    %c0_i32_1 = arith.constant 0 : i32
    return %c0_i32, %c0_i32_0 : i32, i32
  }
  func.func @transform_4(%arg0: i32, %arg1: i32) -> (i32, i32) {
    %c0_i32 = arith.constant 0 : i32
    %c0_i32_0 = arith.constant 0 : i32
    %c0_i32_1 = arith.constant 0 : i32
    return %c0_i32, %c0_i32_0 : i32, i32
  }
  func.func @transform_5(%arg0: i32, %arg1: i32) -> (i32, i32, i32) {
    %c0_i32 = arith.constant 0 : i32
    %c0_i32_0 = arith.constant 0 : i32
    return %arg0, %arg1, %c0_i32 : i32, i32, i32
  }
  func.func @transform_6(%arg0: i32, %arg1: i32) -> (i32, i32, i32) {
    %c0_i32 = arith.constant 0 : i32
    %c0_i32_0 = arith.constant 0 : i32
    return %arg0, %arg1, %c0_i32 : i32, i32, i32
  }
}

</mosaic_0001>

<llo_original>
// kernel: tpu_custom_call.1
$region0: #{tpu_custom_call.1}
  #allocation0 [shape = 'u32[]', space=smem, size = 0x4, offset = 0x4, fixed_abs, tag = 'smem constant byte address 0x4 - core index']
  #allocation1 [shape = 'u32[144,128]{1,0:T(1,128)}', space=vmem, size = 0x12000, scoped, tag = 'internal scratch']
  #allocation2 [shape = 's32[1]{0:T(128)S(6)}', space=smem, size = 0x200, scoped, tag = 'scoped memory for tpu_custom_call.1']
  %s0 = inlined_call_operand.hbm [shape: s32[2], index: 0, kind: input, shape index: {}]
  %s1 = inlined_call_operand.hbm [shape: s32[2], index: 1, kind: input, shape index: {}]
  %s2 = inlined_call_operand.<no memory space> [shape: s32[1], index: 2, kind: input, shape index: {}]
  %s3 = inlined_call_operand.vmem [shape: s32[1,256], index: 3, kind: input, shape index: {}]
  %s4 = inlined_call_operand.hbm [shape: s32[1,256], index: 4, kind: input, shape index: {}]
  %s5 = inlined_call_operand.vmem [shape: f32[2,4,256], index: 5, kind: input, shape index: {}]
  %s6 = inlined_call_operand.hbm [shape: f32[2,4,256], index: 6, kind: output, shape index: {}]
  %s7 = sld [smem:[#allocation0]]
  $region46: #{tpu_custom_call.1} parent=0
    _
  %s9 = ssub.s32 1, %s7
  %s10 = scalar_select 0, %s9, %s7
  %11 = sst [smem:[#allocation2]] %s2
  $region1: #{tpu_custom_call.1} parent=0
    #allocation3 [shape = 'u8[512]{0}', space=smem, size = 0x200, scoped, tag = 'input window, operand 0, single buffered']
    #allocation4 [shape = 's32[1]{0}', space=sflag, size = 0x4, scoped, tag = 'scoped memory for tpu_custom_call.1']
    #allocation5 [shape = 's32[1]{0}', space=sflag, size = 0x4, scoped, tag = 'scoped memory for tpu_custom_call.1']
    #allocation6 [shape = 's32[1]{0}', space=sflag, size = 0x4, scoped, tag = 'scoped memory for tpu_custom_call.1']
    #allocation7 [shape = 'u8[512]{0}', space=smem, size = 0x200, scoped, tag = 'input window, operand 1, single buffered']
    #allocation8 [shape = 's32[1]{0}', space=sflag, size = 0x4, scoped, tag = 'scoped memory for tpu_custom_call.1']
    #allocation9 [shape = 'u8[1024]{0}', space=vmem, size = 0x400, scoped, tag = 'input window, operand 4, single buffered']
    #allocation10 [shape = 'u8[8192]{0}', space=vmem, size = 0x2000, scoped, tag = 'output window, operand 0, single buffered']
    %12 = vsyncpa [#allocation6], 0
    %13 = vsyncpa [#allocation8], 0
    %14 = vsyncpa [#allocation4], 0
    %15 = vsyncpa [#allocation5], 0
    // Predicated region
    $region2: #{tpu_custom_call.1} parent=1 // pred_check
      _
    $region3: #{tpu_custom_call.1} parent=1 // pred_check_branch
      %17 = sbr.rel (0) target = $region5
    $region4: #{tpu_custom_call.1} parent=1 // pred_region
      %s19 = ssub.s32 16, 16
      %20 = vsyncadd [#allocation6], %s19
      %23 = dma.hbm_to_smem %s0, 16, [#allocation3], [#allocation6]
    $region5: #{tpu_custom_call.1} parent=1 // pred_fallthru
      _
    // Predicated region
    $region6: #{tpu_custom_call.1} parent=1 // pred_check
      _
    $region7: #{tpu_custom_call.1} parent=1 // pred_check_branch
      %25 = sbr.rel (0) target = $region9
    $region8: #{tpu_custom_call.1} parent=1 // pred_region
      %s27 = ssub.s32 16, 16
      %28 = vsyncadd [#allocation8], %s27
      %31 = dma.hbm_to_smem %s1, 16, [#allocation7], [#allocation8]
    $region9: #{tpu_custom_call.1} parent=1 // pred_fallthru
      _
    // Predicated region
    $region10: #{tpu_custom_call.1} parent=1 // pred_check
      _
    $region11: #{tpu_custom_call.1} parent=1 // pred_check_branch
      %33 = sbr.rel (0) target = $region13
    $region12: #{tpu_custom_call.1} parent=1 // pred_region
      _
    $region13: #{tpu_custom_call.1} parent=1 // pred_fallthru
      _
    // Predicated region
    $region14: #{tpu_custom_call.1} parent=1 // pred_check
      _
    $region15: #{tpu_custom_call.1} parent=1 // pred_check_branch
      %35 = sbr.rel (0) target = $region17
    $region16: #{tpu_custom_call.1} parent=1 // pred_region
      _
    $region17: #{tpu_custom_call.1} parent=1 // pred_fallthru
      _
    // Predicated region
    $region18: #{tpu_custom_call.1} parent=1 // pred_check
      _
    $region19: #{tpu_custom_call.1} parent=1 // pred_check_branch
      %37 = sbr.rel (0) target = $region21
    $region20: #{tpu_custom_call.1} parent=1 // pred_region
      %s39 = ssub.s32 32, 32
      %40 = vsyncadd [#allocation4], %s39
      %s42 = sshll.u32 [#allocation9], 4
      %s43 = int_to_ptr.vmem [resolvable:$true] %s42
      %45 = dma.hbm_to_vmem [thread:$0]  %s4, 32, %s43, [#allocation4]
    $region21: #{tpu_custom_call.1} parent=1 // pred_fallthru
      _
    // Predicated region
    $region22: #{tpu_custom_call.1} parent=1 // pred_check
      _
    $region23: #{tpu_custom_call.1} parent=1 // pred_check_branch
      %47 = sbr.rel (0) target = $region25
    $region24: #{tpu_custom_call.1} parent=1 // pred_region
      _
    $region25: #{tpu_custom_call.1} parent=1 // pred_fallthru
      _
    // Predicated region
    $region26: #{tpu_custom_call.1} parent=1 // pred_check
      _
    $region27: #{tpu_custom_call.1} parent=1 // pred_check_branch
      %49 = sbr.rel (0) target = $region29
    $region28: #{tpu_custom_call.1} parent=1 // pred_region
      %50 = dma.done [#allocation6], 16
    $region29: #{tpu_custom_call.1} parent=1 // pred_fallthru
      _
    // Predicated region
    $region30: #{tpu_custom_call.1} parent=1 // pred_check
      _
    $region31: #{tpu_custom_call.1} parent=1 // pred_check_branch
      %52 = sbr.rel (0) target = $region33
    $region32: #{tpu_custom_call.1} parent=1 // pred_region
      %53 = dma.done [#allocation8], 16
    $region33: #{tpu_custom_call.1} parent=1 // pred_fallthru
      _
    // Predicated region
    $region34: #{tpu_custom_call.1} parent=1 // pred_check
      _
    $region35: #{tpu_custom_call.1} parent=1 // pred_check_branch
      %55 = sbr.rel (0) target = $region37
    $region36: #{tpu_custom_call.1} parent=1 // pred_region
      %56 = dma.done [#allocation4], 32
    $region37: #{tpu_custom_call.1} parent=1 // pred_fallthru
      _
    %57 = sfence
    %s58 = sld [smem:[#allocation2]]
    %s59 = smul.u32 0, 2
    %v60 = vld [vmem:[%s3] sm:$0x3]
    %v61 = vld [vmem:[#allocation9] sm:$0x3]
    %s62 = sld [smem:[#allocation3 + %s59]]
    %s63 = sld [smem:[#allocation7 + %s59]]
    %v64 = vstv %s62
    %vm65 = vcmp.ge.s32.totalorder %v60, %v64
    %s66 = sadd.s32 %s62, %s58
    %v67 = vstv %s66
    %vm68 = vcmp.lt.s32.totalorder %v60, %v67
    %vm69 = vmand %vm65, %vm68
    %v70 = vstv %s63
    %vm71 = vcmp.ge.s32.totalorder %v61, %v70
    %vm72 = vmand %vm69, %vm71
    %s73 = sadd.s32 %s63, %s58
    %v74 = vstv %s73
    %vm75 = vcmp.lt.s32.totalorder %v61, %v74
    %vm76 = vmand %vm72, %vm75
    %v77 = vld [vmem:[%s5] sm:$0xff]
    %v78 = vsel %vm76, 1, 0
    %v79 = vlaneseq
    %v80 = vshrl.u32 %v79, 7
    %v81 = vsub.s32 0, %v80
    %v82 = vrot.slane %v78, %v81
    %v83 = vlaneseq
    %v84 = vshrl.u32 %v83, 7
    %v85 = vsub.s32 1, %v84
    %v86 = vrot.slane %v78, %v85
    %vm87 = vcmp.eq.s32.totalorder %v82, 1
    %vm88 = vcmp.eq.s32.totalorder %v86, 1
    %v90 = vcombine.high %v77, %v77
    %v92 = vsel %vm87, 0.0, %v77
    %v93 = vsel %vm88, 0.0, %v90
    %v96 = vcombine.low %v92, %v93
    %98 = vst [vmem:[#allocation10] sm:$0xff] %v96
    %s99 = sadd.s32 %s59, 1
    %s100 = sld [smem:[#allocation3 + %s99]]
    %s101 = sld [smem:[#allocation7 + %s99]]
    %v102 = vstv %s100
    %vm103 = vcmp.ge.s32.totalorder %v60, %v102
    %s104 = sadd.s32 %s100, %s58
    %v105 = vstv %s104
    %vm106 = vcmp.lt.s32.totalorder %v60, %v105
    %vm107 = vmand %vm103, %vm106
    %v108 = vstv %s101
    %vm109 = vcmp.ge.s32.totalorder %v61, %v108
    %vm110 = vmand %vm107, %vm109
    %s111 = sadd.s32 %s101, %s58
    %v112 = vstv %s111
    %vm113 = vcmp.lt.s32.totalorder %v61, %v112
    %vm114 = vmand %vm110, %vm113
    %s115 = scalar_lea.vmem %s5, 8
    %v116 = vld [vmem:[%s115] sm:$0xff]
    %v117 = vsel %vm114, 1, 0
    %v118 = vlaneseq
    %v119 = vshrl.u32 %v118, 7
    %v120 = vsub.s32 0, %v119
    %v121 = vrot.slane %v117, %v120
    %v122 = vlaneseq
    %v123 = vshrl.u32 %v122, 7
    %v124 = vsub.s32 1, %v123
    %v125 = vrot.slane %v117, %v124
    %vm126 = vcmp.eq.s32.totalorder %v121, 1
    %vm127 = vcmp.eq.s32.totalorder %v125, 1
    %v129 = vcombine.high %v116, %v116
    %v131 = vsel %vm126, 0.0, %v116
    %v132 = vsel %vm127, 0.0, %v129
    %v135 = vcombine.low %v131, %v132
    %s137 = scalar_lea.vmem [#allocation10], 8
    %138 = vst [vmem:[%s137] sm:$0xff] %v135
    // Predicated region
    $region38: #{tpu_custom_call.1} parent=1 // pred_check
      _
    $region39: #{tpu_custom_call.1} parent=1 // pred_check_branch
      %140 = sbr.rel (0) target = $region41
    $region40: #{tpu_custom_call.1} parent=1 // pred_region
      %s142 = ssub.s32 256, 256
      %143 = vsyncadd [#allocation5], %s142
      %s144 = sshll.u32 [#allocation10], 4
      %s145 = int_to_ptr.vmem [resolvable:$true] %s144
      %150 = dma.vmem_to_hbm [thread:$0]  %s145, 256, %s6, [#allocation5], 128, 128, 8
    $region41: #{tpu_custom_call.1} parent=1 // pred_fallthru
      _
    // Predicated region
    $region42: #{tpu_custom_call.1} parent=1 // pred_check
      _
    $region43: #{tpu_custom_call.1} parent=1 // pred_check_branch
      %152 = sbr.rel (0) target = $region45
    $region44: #{tpu_custom_call.1} parent=1 // pred_region
      %153 = dma.done [#allocation5], 256
    $region45: #{tpu_custom_call.1} parent=1 // pred_fallthru
      _
    %154 = vsyncpa [#allocation4], 1
    %155 = vsyncpa [#allocation5], 1
    %156 = vsyncpa [#allocation6], 1
    %157 = vsyncpa [#allocation8], 1

</llo_original>
